<compile_context>
chip_gen: v6e
topology: v6e:2x2x1
jax: 0.10.0
libtpu: 0.0.40
codegen_flags: <defaults>
</compile_context>

<pallas_src>
import functools

import jax
import jax.numpy as jnp
from jax.experimental import pallas as pl
from jax.experimental.pallas import tpu as pltpu


def _sines_cosines_kernel(scales_ref, x_ref, out_ref, *, w0: float):
    # scales_ref: SMEM, shape (2,)            -> [scale_sin, scale_cos]
    # x_ref:      VMEM, shape (1, BC, BL)     -> input tile
    # out_ref:    VMEM, shape (1, 2, BC, BL)  -> branch 0 = sin, branch 1 = cos
    s_sin = scales_ref[0]          # hoisted scalar reads (one per grid step)
    s_cos = scales_ref[1]
    xw = w0 * x_ref[0]             # (BC, BL)
    out_ref[0, 0, :, :] = s_sin * jnp.sin(xw)
    out_ref[0, 1, :, :] = s_cos * jnp.cos(xw)


def _choose_tiles(C: int, HW: int, elem_bytes: int, target_bytes: int = 1 << 20):
    """Pick (BC, BL): ~target_bytes of input per block, TPU-tile legal."""
    # Lane tile: full H*W when modest, else a large multiple of 128.
    max_lane = 32768                                   # 128 KiB per f32 row
    BL = HW if HW <= max_lane else (max_lane // 128) * 128
    # Channel (sublane) tile: aim for ~target_bytes of input per block.
    rows = max(1, target_bytes // (BL * elem_bytes))
    if C <= 8 or C <= rows:
        BC = C                                         # full dim -> always legal
    else:
        BC = max(8, min(C, (int(rows) // 8) * 8))      # multiple of 8
    return BC, BL


def sines_cosines_learnable(x, *, w0: float, scale_sin, scale_cos):
    """x: (N, C, H, W) float32.  Returns (N, 2*C, H, W) == torch.cat(dim=1)."""
    N, C, H, W = x.shape
    HW = H * W
    x3 = x.reshape(N, C, HW)

    BC, BL = _choose_tiles(C, HW, jnp.dtype(x.dtype).itemsize)
    grid = (N, pl.cdiv(C, BC), pl.cdiv(HW, BL))

    scales = jnp.asarray([scale_sin, scale_cos], dtype=x.dtype)

    out = pl.pallas_call(
        functools.partial(_sines_cosines_kernel, w0=w0),
        out_shape=jax.ShapeDtypeStruct((N, 2, C, HW), x.dtype),
        grid=grid,
        in_specs=[
            pl.BlockSpec(memory_space=pltpu.SMEM),                  # scales
            pl.BlockSpec((1, BC, BL), lambda n, c, l: (n, c, l)),   # x tile
        ],
        out_specs=pl.BlockSpec((1, 2, BC, BL), lambda n, c, l: (n, 0, c, l)),
        compiler_params=pltpu.CompilerParams(
            dimension_semantics=("parallel", "parallel", "parallel")),
    )(scales, x3)

    # (N, 2, C, H*W) is contiguous, so this reshape is free and is exactly
    # torch.cat([sin_branch, cos_branch], dim=1).
    return out.reshape(N, 2 * C, H, W)


if __name__ == "__main__":
    key = jax.random.PRNGKey(0)

    # Module hyperparameters (deterministic "learnable" params initialized here).
    w0 = 30.0
    learnable = True
    init_scale = 2.0
    # Scale(scale) holds a single learnable scalar initialized to `scale`.
    scale_sin = init_scale if learnable else 1.0
    scale_cos = init_scale if learnable else 1.0

    # NCHW input, small shapes.
    x = jax.random.normal(key, (2, 4, 16, 16), dtype=jnp.float32)

    y = sines_cosines_learnable(x, w0=w0, scale_sin=scale_sin, scale_cos=scale_cos)
    y = jax.block_until_ready(y)

    # Reference check in plain JAX (same math as the PyTorch forward).
    xw = w0 * x
    ref = jnp.concatenate([scale_sin * jnp.sin(xw), scale_cos * jnp.cos(xw)], axis=1)
    assert y.shape == (2, 8, 16, 16)
    assert jnp.allclose(y, ref, atol=1e-5, rtol=1e-5)

    print("KERNEL_OK")
</pallas_src>

<mosaic_0001>
module attributes {stable_mosaic.version = 11 : i64} {
  func.func @_sines_cosines_kernel(%arg0: i32, %arg1: i32, %arg2: i32, %arg3: memref<2xf32, #tpu.memory_space<smem>>, %arg4: memref<1x4x256xf32, #tpu.memory_space<vmem>>, %arg5: memref<1x2x4x256xf32, #tpu.memory_space<vmem>>) attributes {dimension_semantics = [#tpu.dimension_semantics<parallel>, #tpu.dimension_semantics<parallel>, #tpu.dimension_semantics<parallel>], iteration_bounds = array<i64: 2, 1, 1>, scalar_prefetch = 0 : i64, scratch_operands = 0 : i64, tpu.core_type = #tpu.core_type<tc>, window_params = [{transform_indices = @transform_0, window_bounds = array<i64: 2>}, {transform_indices = @transform_1, window_bounds = array<i64: 1, 4, 256>}, {transform_indices = @transform_2, window_bounds = array<i64: 1, 2, 4, 256>}]} {
    %c0 = arith.constant 0 : index
    %0 = memref.load %arg3[%c0] : memref<2xf32, #tpu.memory_space<smem>>
    %c1 = arith.constant 1 : index
    %1 = memref.load %arg3[%c1] : memref<2xf32, #tpu.memory_space<smem>>
    %c0_0 = arith.constant 0 : index
    %c0_1 = arith.constant 0 : index
    %c0_2 = arith.constant 0 : index
    %2 = vector.load %arg4[%c0_0, %c0_1, %c0_2] : memref<1x4x256xf32, #tpu.memory_space<vmem>>, vector<1x4x256xf32>
    %3 = vector.shape_cast %2 : vector<1x4x256xf32> to vector<4x256xf32>
    %cst = arith.constant 3.000000e+01 : f32
    %4 = vector.broadcast %cst : f32 to vector<4x256xf32>
    %5 = arith.mulf %4, %3 : vector<4x256xf32>
    %6 = math.sin %5 : vector<4x256xf32>
    %7 = vector.broadcast %0 : f32 to vector<4x256xf32>
    %8 = arith.mulf %7, %6 : vector<4x256xf32>
    %c0_3 = arith.constant 0 : index
    %c0_4 = arith.constant 0 : index
    %c0_5 = arith.constant 0 : index
    %c0_6 = arith.constant 0 : index
    %9 = vector.load %arg5[%c0_3, %c0_4, %c0_5, %c0_6] : memref<1x2x4x256xf32, #tpu.memory_space<vmem>>, vector<1x1x4x256xf32>
    %10 = vector.shape_cast %9 : vector<1x1x4x256xf32> to vector<4x256xf32>
    %11 = vector.shape_cast %8 : vector<4x256xf32> to vector<1x1x4x256xf32>
    tpu.vector_store %arg5[%c0_3, %c0_4, %c0_5, %c0_6], %11 {strides = array<i32>} : memref<1x2x4x256xf32, #tpu.memory_space<vmem>>, vector<1x1x4x256xf32>,
    %12 = math.cos %5 : vector<4x256xf32>
    %13 = vector.broadcast %1 : f32 to vector<4x256xf32>
    %14 = arith.mulf %13, %12 : vector<4x256xf32>
    %c0_7 = arith.constant 0 : index
    %c1_8 = arith.constant 1 : index
    %c0_9 = arith.constant 0 : index
    %c0_10 = arith.constant 0 : index
    %15 = vector.load %arg5[%c0_7, %c1_8, %c0_9, %c0_10] : memref<1x2x4x256xf32, #tpu.memory_space<vmem>>, vector<1x1x4x256xf32>
    %16 = vector.shape_cast %15 : vector<1x1x4x256xf32> to vector<4x256xf32>
    %17 = vector.shape_cast %14 : vector<4x256xf32> to vector<1x1x4x256xf32>
    tpu.vector_store %arg5[%c0_7, %c1_8, %c0_9, %c0_10], %17 {strides = array<i32>} : memref<1x2x4x256xf32, #tpu.memory_space<vmem>>, vector<1x1x4x256xf32>,
    return
  }
  func.func @transform_0(%arg0: i32, %arg1: i32, %arg2: i32) -> i32 {
    %c0_i32 = arith.constant 0 : i32
    %c0_i32_0 = arith.constant 0 : i32
    return %c0_i32 : i32
  }
  func.func @transform_1(%arg0: i32, %arg1: i32, %arg2: i32) -> (i32, i32, i32) {
    %c0_i32 = arith.constant 0 : i32
    return %arg0, %arg1, %arg2 : i32, i32, i32
  }
  func.func @transform_2(%arg0: i32, %arg1: i32, %arg2: i32) -> (i32, i32, i32, i32) {
    %c0_i32 = arith.constant 0 : i32
    %c0_i32_0 = arith.constant 0 : i32
    return %arg0, %c0_i32, %arg1, %arg2 : i32, i32, i32, i32
  }
}

</mosaic_0001>

<llo_original>
// kernel: tpu_custom_call.1
$region0: #{tpu_custom_call.1}
  #allocation0 [shape = 'u32[]', space=smem, size = 0x4, offset = 0x4, fixed_abs, tag = 'smem constant byte address 0x4 - core index']
  #allocation1 [shape = 'u32[144,128]{1,0:T(1,128)}', space=vmem, size = 0x12000, scoped, tag = 'internal scratch']
  %s0 = inlined_call_operand.hbm [shape: f32[2], index: 0, kind: input, shape index: {}]
  %s1 = inlined_call_operand.hbm [shape: f32[2,4,256], index: 1, kind: input, shape index: {}]
  %s2 = inlined_call_operand.hbm [shape: f32[2,2,4,256], index: 2, kind: output, shape index: {}]
  %s3 = sld [smem:[#allocation0]]
  $region49: #{tpu_custom_call.1} parent=0
    _
  %s5 = ssub.s32 1, %s3
  %s6 = scalar_select 0, %s5, %s3
  $region1: #{tpu_custom_call.1} parent=0
    #allocation2 [shape = 'u8[512]{0}', space=smem, size = 0x200, scoped, tag = 'input window, operand 0, single buffered']
    #allocation3 [shape = 's32[2]{0}', space=sflag, size = 0x8, scoped, tag = 'scoped memory for tpu_custom_call.1']
    #allocation4 [shape = 's32[2]{0}', space=sflag, size = 0x8, scoped, tag = 'scoped memory for tpu_custom_call.1']
    #allocation5 [shape = 's32[2]{0}', space=sflag, size = 0x8, scoped, tag = 'scoped memory for tpu_custom_call.1']
    #allocation6 [shape = 'u8[8192]{0}', space=vmem, size = 0x2000, scoped, tag = 'input window, operand 1']
    #allocation7 [shape = 'u8[16384]{0}', space=vmem, size = 0x4000, scoped, tag = 'output window, operand 0']
    %7 = vsyncpa [#allocation5], 0
    %8 = vsyncpa [#allocation3], 0
    %s9 = scalar_lea.sflag [#allocation3], 1
    %10 = vsyncpa %s9, 0
    %11 = vsyncpa [#allocation4], 0
    %s12 = scalar_lea.sflag [#allocation4], 1
    %13 = vsyncpa %s12, 0
    loop: start=0, step=1, limit=4
    $region2: #{tpu_custom_call.1} parent=1 // loop_pre_header
      _
    $region3: #{tpu_custom_call.1} parent=1 // loop_header
      %s15 = sphi 0, %s19
      %p16 = scmp.ge.s32.totalorder %s15, 4
      %s22 = sphi 0, %s41
      %s23 = sphi 0, %s37
      %s24 = sphi 0, %s33
      %s25 = sphi 0, %s22
      %s26 = sphi 0, %s23
      %s27 = sphi 0, %s24
      %s28 = sphi 0, %s25
      %s29 = sphi 0, %s26
      %s30 = sphi 0, %s27
      %s42 = sphi 0, %s42
      %s44 = sphi 0, %s42
      %s45 = sphi 0, %s44
      %s59 = sphi 0, %s45
      %s69 = sphi 0, %s71
      %s72 = sphi 0, %s69
      %s73 = sphi 0, %s72
      %s89 = sphi 0, %s73
      %s99 = sphi 0, %s101
      %s102 = sphi 0, %s99
      %s103 = sphi 0, %s102
      %s119 = sphi 0, %s103
    $region4: #{tpu_custom_call.1} parent=1 // loop_header_branch
      %18 = sbr.rel (%p16) target = $region8
    $region5: #{tpu_custom_call.1} parent=1 // loop_body
      %s20 = ssub.s32 %s15, 1
      %s21 = ssub.s32 %s15, 2
      %s31 = sadd.s32 1, %s24
      %p32 = scmp.ge.s32.totalorder %s31, 1
      %s33 = scalar_select %p32, 0, %s31
      %s34 = sadd.s32 1, %s23
      %s35 = scalar_select %p32, %s34, %s23
      %p36 = scmp.ge.s32.totalorder %s35, 1
      %s37 = scalar_select %p36, 0, %s35
      %s38 = sadd.s32 1, %s22
      %s39 = scalar_select %p36, %s38, %s22
      %p40 = scmp.ge.s32.totalorder %s39, 2
      %s41 = scalar_select %p40, 0, %s39
      %s43 = sadd.s32 %s42, 1
      %p46 = scmp.eq.s32.totalorder %s15, 1
      %p47 = scmp.ne.s32.totalorder %s42, %s44
      %p48 = scmp.eq.s32.totalorder %s15, 0
      %p49 = por %p47, %p48
      %p50 = scmp.ne.s32.totalorder %s42, %s44
      %p51 = scmp.eq.s32.totalorder %s20, 1
      %p52 = por %p50, %p51
      %p53 = scmp.ne.s32.totalorder %s44, %s45
      %p54 = scmp.eq.s32.totalorder %s20, 0
      %p55 = por %p53, %p54
      %p56 = scmp.ne.s32.totalorder %s44, %s45
      %p57 = scmp.eq.s32.totalorder %s21, 1
      %p58 = por %p56, %p57
      %p60 = scmp.ne.s32.totalorder %s45, %s59
      %p61 = scmp.eq.s32.totalorder %s21, 0
      %p62 = por %p60, %p61
      %s63 = ssub.s32 %s22, %s41
      %s64 = ssub.s32 %s23, %s37
      %s65 = sor.u32 %s63, %s64
      %s66 = ssub.s32 %s24, %s33
      %s67 = sor.u32 %s65, %s66
      %p68 = scmp.eq.s32.totalorder %s67, 0
      %s70 = sadd.s32 %s69, 1
      %s71 = scalar_select %p68, %s69, %s70
      %p74 = pneg %p68
      %p75 = scmp.eq.s32.totalorder %s15, 1
      %p76 = por %p74, %p75
      %p77 = scmp.ne.s32.totalorder %s69, %s72
      %p78 = scmp.eq.s32.totalorder %s15, 0
      %p79 = por %p77, %p78
      %p80 = scmp.ne.s32.totalorder %s69, %s72
      %p81 = scmp.eq.s32.totalorder %s20, 1
      %p82 = por %p80, %p81
      %p83 = scmp.ne.s32.totalorder %s72, %s73
      %p84 = scmp.eq.s32.totalorder %s20, 0
      %p85 = por %p83, %p84
      %p86 = scmp.ne.s32.totalorder %s72, %s73
      %p87 = scmp.eq.s32.totalorder %s21, 1
      %p88 = por %p86, %p87
      %p90 = scmp.ne.s32.totalorder %s73, %s89
      %p91 = scmp.eq.s32.totalorder %s21, 0
      %p92 = por %p90, %p91
      %s93 = ssub.s32 %s22, %s41
      %s94 = ssub.s32 %s23, %s37
      %s95 = sor.u32 %s93, %s94
      %s96 = ssub.s32 %s24, %s33
      %s97 = sor.u32 %s95, %s96
      %p98 = scmp.eq.s32.totalorder %s97, 0
      %s100 = sadd.s32 %s99, 1
      %s101 = scalar_select %p98, %s99, %s100
      %p104 = pneg %p98
      %p105 = scmp.eq.s32.totalorder %s15, 1
      %p106 = por %p104, %p105
      %p107 = scmp.ne.s32.totalorder %s99, %s102
      %p108 = scmp.eq.s32.totalorder %s15, 0
      %p109 = por %p107, %p108
      %p110 = scmp.ne.s32.totalorder %s99, %s102
      %p111 = scmp.eq.s32.totalorder %s20, 1
      %p112 = por %p110, %p111
      %p113 = scmp.ne.s32.totalorder %s102, %s103
      %p114 = scmp.eq.s32.totalorder %s20, 0
      %p115 = por %p113, %p114
      %p116 = scmp.ne.s32.totalorder %s102, %s103
      %p117 = scmp.eq.s32.totalorder %s21, 1
      %p118 = por %p116, %p117
      %p120 = scmp.ne.s32.totalorder %s103, %s119
      %p121 = scmp.eq.s32.totalorder %s21, 0
      %p122 = por %p120, %p121
      %p123 = scmp.le.s32.totalorder 1, %s15
      %p124 = scmp.lt.s32.totalorder %s15, 3
      %p125 = pnand %p123, %p124
      %p126 = pneg %p125
      // Predicated region
      $region9: #{tpu_custom_call.1} parent=5 // pred_check
        _
      $region10: #{tpu_custom_call.1} parent=5 // pred_check_branch
        %128 = sbr.rel (%p125) target = $region12
      $region11: #{tpu_custom_call.1} parent=5 // pred_region
        %s129 = ssub.s32 %s15, 1
        // Predicated region
        $region13: #{tpu_custom_call.1} parent=11 // pred_check
          %p130 = pneg %p55
        $region14: #{tpu_custom_call.1} parent=11 // pred_check_branch
          %132 = sbr.rel (%p130) target = $region16
        $region15: #{tpu_custom_call.1} parent=11 // pred_region
          %s134 = ssub.s32 16, 16
          %135 = vsyncadd [#allocation5], %s134
          %138 = dma.hbm_to_smem %s0, 16, [#allocation2], [#allocation5]
        $region16: #{tpu_custom_call.1} parent=11 // pred_fallthru
          _
      $region12: #{tpu_custom_call.1} parent=5 // pred_fallthru
        _
      %p139 = scmp.lt.s32.totalorder %s15, 2
      // Predicated region
      $region17: #{tpu_custom_call.1} parent=5 // pred_check
        %p140 = pneg %p139
      $region18: #{tpu_custom_call.1} parent=5 // pred_check_branch
        %142 = sbr.rel (%p140) target = $region20
      $region19: #{tpu_custom_call.1} parent=5 // pred_region
        // Predicated region
        $region21: #{tpu_custom_call.1} parent=19 // pred_check
          %p143 = pneg %p79
        $region22: #{tpu_custom_call.1} parent=19 // pred_check_branch
          %145 = sbr.rel (%p143) target = $region24
        $region23: #{tpu_custom_call.1} parent=19 // pred_region
          %s146 = sand.u32 %s69, 1
          %s147 = scalar_lea.sflag [#allocation3], %s146
          %s148 = sand.u32 %s69, 1
          %s149 = smul.addr %s148, 8
          %s150 = scalar_lea.vmem [#allocation6], %s149
          %s151 = smul.u32 2, %s24
          %s153 = ssub.s32 128, 128
          %154 = vsyncadd %s147, %s153
          %s155 = smul.addr %s23, 2
          %s156 = sadd.s32 %s151, %s155
          %s157 = smul.addr %s22, 2
          %s158 = sadd.s32 %s156, %s157
          %s159 = smul.addr %s158, 64
          %s160 = scalar_lea.hbm %s1, %s159
          %s162 = sshll.u32 %s150, 4
          %s163 = int_to_ptr.vmem [resolvable:$true] %s162
          %165 = dma.hbm_to_vmem [thread:$0]  %s160, 128, %s163, %s147
        $region24: #{tpu_custom_call.1} parent=19 // pred_fallthru
          _
      $region20: #{tpu_custom_call.1} parent=5 // pred_fallthru
        _
      %p166 = scmp.le.s32.totalorder 1, %s15
      %p167 = scmp.lt.s32.totalorder %s15, 3
      %p168 = pnand %p166, %p167
      %p169 = pneg %p168
      // Predicated region
      $region25: #{tpu_custom_call.1} parent=5 // pred_check
        _
      $region26: #{tpu_custom_call.1} parent=5 // pred_check_branch
        %171 = sbr.rel (%p168) target = $region28
      $region27: #{tpu_custom_call.1} parent=5 // pred_region
        %s172 = ssub.s32 %s15, 1
        // Predicated region
        $region29: #{tpu_custom_call.1} parent=27 // pred_check
          %p173 = pneg %p55
        $region30: #{tpu_custom_call.1} parent=27 // pred_check_branch
          %175 = sbr.rel (%p173) target = $region32
        $region31: #{tpu_custom_call.1} parent=27 // pred_region
          %176 = dma.done [#allocation5], 16
        $region32: #{tpu_custom_call.1} parent=27 // pred_fallthru
          _
        %s177 = sand.u32 %s72, 1
        %s178 = scalar_lea.sflag [#allocation3], %s177
        %s179 = sand.u32 %s72, 1
        %s180 = smul.addr %s179, 8
        %s181 = scalar_lea.vmem [#allocation6], %s180
        // Predicated region
        $region33: #{tpu_custom_call.1} parent=27 // pred_check
          %p182 = pneg %p85
        $region34: #{tpu_custom_call.1} parent=27 // pred_check_branch
          %184 = sbr.rel (%p182) target = $region36
        $region35: #{tpu_custom_call.1} parent=27 // pred_region
          %185 = dma.done %s178, 128
        $region36: #{tpu_custom_call.1} parent=27 // pred_fallthru
          _
        %186 = sfence
        %p187 = pneg %p55
        %p188 = pneg %p52
        %s189 = sand.u32 %s72, 1
        %s190 = scalar_lea.sflag [#allocation3], %s189
        %s191 = sand.u32 %s72, 1
        %s192 = smul.addr %s191, 8
        %s193 = scalar_lea.vmem [#allocation6], %s192
        %p194 = pneg %p85
        %p195 = pneg %p82
        %p196 = pneg %p115
        %p197 = pneg %p112
        %s198 = sand.u32 %s102, 1
        %s199 = scalar_lea.sflag [#allocation4], %s198
        %s200 = sand.u32 %s102, 1
        %s201 = smul.addr %s200, 16
        %s202 = scalar_lea.vmem [#allocation7], %s201
        %s203 = smul.u32 2, %s27
        %s204 = smul.u32 2, %s27
        %s205 = sld [smem:[#allocation2]]
        %s206 = sld [smem:[#allocation2 + $0x1]]
        %v207 = vld [vmem:[%s181] sm:$0xff]
        %v208 = vmul.f32 %v207, 30.0
        %v209 = vand.u32 2147483647, %v208
        %vm210 = vcmp.le.f32.partialorder %v209, 0.7853982
        %vm211 = vcmp.lt.s32.totalorder %v208, 0
        %v212 = vand.u32 %v208, 2139095040
        %v213 = vshrl.u32 %v212, 23
        %v214 = vsub.s32 %v213, 127
        %v215 = vand.u32 2147483647, %v208
        %v216 = vand.u32 %v215, 8388607
        %v217 = vor.u32 %v216, 8388608
        %v218 = vsub.s32 0, %v217
        %v219 = vadd.s32 %v214, 1
        %vm220 = vcmp.gt.s32.totalorder %v219, 0
        %v221 = vsel %vm220, %v219, 0
        %v222 = vshrl.u32 %v221, 5
        %v223 = vand.u32 %v221, 31
        %v224 = vsub.s32 32, %v223
        %v225 = vshrl.u32 683565275, %v224
        %v226 = vshll.u32 683565275, %v223
        %v227 = vshrl.u32 2475754826, %v224
        %v228 = vor.u32 %v226, %v227
        %v229 = vshll.u32 2475754826, %v223
        %v230 = vshrl.u32 2131351028, %v224
        %v231 = vor.u32 %v229, %v230
        %v232 = vshll.u32 2131351028, %v223
        %v233 = vshrl.u32 2102212464, %v224
        %v234 = vor.u32 %v232, %v233
        %v235 = vshll.u32 2102212464, %v223
        %v236 = vshrl.u32 920167782, %v224
        %v237 = vor.u32 %v235, %v236
        %v238 = vshll.u32 920167782, %v223
        %v239 = vshrl.u32 1326507024, %v224
        %v240 = vor.u32 %v238, %v239
        %vm241 = vcmp.lt.s32.totalorder %v222, 1
        %vm242 = vcmp.lt.s32.totalorder %v222, 2
        %vm243 = vcmp.lt.s32.totalorder %v222, 3
        %vm244 = vcmp.lt.s32.totalorder %v222, 4
        %v245 = vsel %vm241, %v225, %v228
        %v246 = vsel %vm244, %v234, 2102212464
        %v247 = vsel %vm243, %v231, %v246
        %v248 = vsel %vm242, %v245, %v247
        %v249 = vsel %vm241, %v228, %v231
        %v250 = vsel %vm244, %v237, 920167782
        %v251 = vsel %vm243, %v234, %v250
        %v252 = vsel %vm242, %v249, %v251
        %v253 = vsel %vm241, %v231, %v234
        %v254 = vsel %vm244, %v240, 1326507024
        %v255 = vsel %vm243, %v237, %v254
        %v256 = vsel %vm242, %v253, %v255
        %v257 = vshll.u32 %v217, 8
        %v258 = vmul.u32.u64.compose %v257, %v256
        %v259 = vextract.low.u32 %v258
        %v260 = vextract.high.u32 %v258
        %v261 = vmul.u32.u64.compose %v257, %v252
        %v262 = vextract.low.u32 %v261
        %v263 = vextract.high.u32 %v261
        %v264 = vmul.u32 %v257, %v248
        %v265 = vadd.s32 %v260, %v262
        %vm266 = vc.u32 %v260, %v262
        %v267 = vadd.s32 %v263, 1
        %v268 = vsel %vm266, %v267, %v263
        %v269 = vadd.s32 %v264, %v268
        %v270 = vadd.s32 %v269, 536870912
        %v271 = vshrl.u32 %v270, 30
        %v272 = vshll.u32 %v271, 30
        %v273 = vsub.s32 %v269, %v272
        %vm274 = vcmp.lt.s32.totalorder %v273, 0
        %v275 = vsub.s32 0, %v273
        %v276 = vsel %vm274, %v275, %v273
        %v277 = vclz %v276
        %v278 = vsub.s32 %v277, 2
        %vm279 = vcmp.gt.s32.totalorder 0, %v278
        %v280 = vsel %vm279, 0, %v278
        %v281 = vsub.s32 32, %v280
        %v282 = vshll.u32 %v273, %v280
        %v283 = vshrl.u32 %v265, %v281
        %v284 = vor.u32 %v282, %v283
        %v285 = vsub.s32 4294967266, %v280
        %v286 = vadd.s32 %v285, 127
        %v287 = vshll.u32 %v286, 23
        %v288 = vor.u32 4788187, %v287
        %v289 = vand.u32 2147483647, %v288
        %v291 = vcvt.s32.f32 %v284
        %v292 = vmul.f32 %v291, %v289
        %v293 = vxor.u32 %v292, 2147483648
        %v294 = vsel %vm211, %v293, %v292
        %v295 = vsub.s32 4, %v271
        %v296 = vsel %vm211, %v295, %v271
        %v297 = vsel %vm210, %v208, %v294
        %v298 = vsel %vm210, 0, %v296
        %v299 = vcosq.f32.pop %v297
        %v300 = vsinq.f32.pop %v297
        %vm301 = vweird.f32 %v208
        %v302 = vadd.s32 %v298, 3
        %v303 = vand.u32 %v302, 3
        %vm304 = vcmp.lt.s32.totalorder %v303, 2
        %vm305 = vcmp.eq.s32.totalorder %v303, 0
        %v306 = vxor.u32 %v300, 2147483648
        %v307 = vsel %vm305, %v299, %v306
        %vm308 = vcmp.eq.s32.totalorder %v303, 2
        %v309 = vxor.u32 %v299, 2147483648
        %v310 = vsel %vm308, %v309, %v300
        %v311 = vsel %vm304, %v307, %v310
        %v312 = vsel %vm301, nan, %v311
        %v313 = vstv %s205
        %v314 = vmul.f32 %v313, %v312
        %315 = vst [vmem:[%s202] sm:$0xff] %v314
        %v316 = vand.u32 2147483647, %v208
        %vm317 = vcmp.le.f32.partialorder %v316, 0.7853982
        %vm318 = vcmp.lt.s32.totalorder %v208, 0
        %v319 = vand.u32 %v208, 2139095040
        %v320 = vshrl.u32 %v319, 23
        %v321 = vsub.s32 %v320, 127
        %v322 = vand.u32 2147483647, %v208
        %v323 = vand.u32 %v322, 8388607
        %v324 = vor.u32 %v323, 8388608
        %v325 = vsub.s32 0, %v324
        %v326 = vadd.s32 %v321, 1
        %vm327 = vcmp.gt.s32.totalorder %v326, 0
        %v328 = vsel %vm327, %v326, 0
        %v329 = vshrl.u32 %v328, 5
        %v330 = vand.u32 %v328, 31
        %v331 = vsub.s32 32, %v330
        %v332 = vshrl.u32 683565275, %v331
        %v333 = vshll.u32 683565275, %v330
        %v334 = vshrl.u32 2475754826, %v331
        %v335 = vor.u32 %v333, %v334
        %v336 = vshll.u32 2475754826, %v330
        %v337 = vshrl.u32 2131351028, %v331
        %v338 = vor.u32 %v336, %v337
        %v339 = vshll.u32 2131351028, %v330
        %v340 = vshrl.u32 2102212464, %v331
        %v341 = vor.u32 %v339, %v340
        %v342 = vshll.u32 2102212464, %v330
        %v343 = vshrl.u32 920167782, %v331
        %v344 = vor.u32 %v342, %v343
        %v345 = vshll.u32 920167782, %v330
        %v346 = vshrl.u32 1326507024, %v331
        %v347 = vor.u32 %v345, %v346
        %vm348 = vcmp.lt.s32.totalorder %v329, 1
        %vm349 = vcmp.lt.s32.totalorder %v329, 2
        %vm350 = vcmp.lt.s32.totalorder %v329, 3
        %vm351 = vcmp.lt.s32.totalorder %v329, 4
        %v352 = vsel %vm348, %v332, %v335
        %v353 = vsel %vm351, %v341, 2102212464
        %v354 = vsel %vm350, %v338, %v353
        %v355 = vsel %vm349, %v352, %v354
        %v356 = vsel %vm348, %v335, %v338
        %v357 = vsel %vm351, %v344, 920167782
        %v358 = vsel %vm350, %v341, %v357
        %v359 = vsel %vm349, %v356, %v358
        %v360 = vsel %vm348, %v338, %v341
        %v361 = vsel %vm351, %v347, 1326507024
        %v362 = vsel %vm350, %v344, %v361
        %v363 = vsel %vm349, %v360, %v362
        %v364 = vshll.u32 %v324, 8
        %v365 = vmul.u32.u64.compose %v364, %v363
        %v366 = vextract.low.u32 %v365
        %v367 = vextract.high.u32 %v365
        %v368 = vmul.u32.u64.compose %v364, %v359
        %v369 = vextract.low.u32 %v368
        %v370 = vextract.high.u32 %v368
        %v371 = vmul.u32 %v364, %v355
        %v372 = vadd.s32 %v367, %v369
        %vm373 = vc.u32 %v367, %v369
        %v374 = vadd.s32 %v370, 1
        %v375 = vsel %vm373, %v374, %v370
        %v376 = vadd.s32 %v371, %v375
        %v377 = vadd.s32 %v376, 536870912
        %v378 = vshrl.u32 %v377, 30
        %v379 = vshll.u32 %v378, 30
        %v380 = vsub.s32 %v376, %v379
        %vm381 = vcmp.lt.s32.totalorder %v380, 0
        %v382 = vsub.s32 0, %v380
        %v383 = vsel %vm381, %v382, %v380
        %v384 = vclz %v383
        %v385 = vsub.s32 %v384, 2
        %vm386 = vcmp.gt.s32.totalorder 0, %v385
        %v387 = vsel %vm386, 0, %v385
        %v388 = vsub.s32 32, %v387
        %v389 = vshll.u32 %v380, %v387
        %v390 = vshrl.u32 %v372, %v388
        %v391 = vor.u32 %v389, %v390
        %v392 = vsub.s32 4294967266, %v387
        %v393 = vadd.s32 %v392, 127
        %v394 = vshll.u32 %v393, 23
        %v395 = vor.u32 4788187, %v394
        %v396 = vand.u32 2147483647, %v395
        %v398 = vcvt.s32.f32 %v391
        %v399 = vmul.f32 %v398, %v396
        %v400 = vxor.u32 %v399, 2147483648
        %v401 = vsel %vm318, %v400, %v399
        %v402 = vsub.s32 4, %v378
        %v403 = vsel %vm318, %v402, %v378
        %v404 = vsel %vm317, %v208, %v401
        %v405 = vsel %vm317, 0, %v403
        %v406 = vcosq.f32.pop %v404
        %v407 = vsinq.f32.pop %v404
        %vm408 = vweird.f32 %v208
        %v409 = vand.u32 %v405, 3
        %vm410 = vcmp.lt.s32.totalorder %v409, 2
        %vm411 = vcmp.eq.s32.totalorder %v409, 0
        %v412 = vxor.u32 %v407, 2147483648
        %v413 = vsel %vm411, %v406, %v412
        %vm414 = vcmp.eq.s32.totalorder %v409, 2
        %v415 = vxor.u32 %v406, 2147483648
        %v416 = vsel %vm414, %v415, %v407
        %v417 = vsel %vm410, %v413, %v416
        %v418 = vsel %vm408, nan, %v417
        %v419 = vstv %s206
        %v420 = vmul.f32 %v419, %v418
        %s421 = scalar_lea.vmem %s202, 8 [#allocation7]
        %422 = vst [vmem:[%s421] sm:$0xff] %v420
        %s423 = sand.u32 %s102, 1
        %s424 = scalar_lea.sflag [#allocation4], %s423
        %s425 = sand.u32 %s102, 1
        %s426 = smul.addr %s425, 16
        %s427 = scalar_lea.vmem [#allocation7], %s426
        // Predicated region
        $region37: #{tpu_custom_call.1} parent=27 // pred_check
          %p428 = pneg %p112
        $region38: #{tpu_custom_call.1} parent=27 // pred_check_branch
          %430 = sbr.rel (%p428) target = $region40
        $region39: #{tpu_custom_call.1} parent=27 // pred_region
          %s431 = smul.u32 2, %s27
          %s433 = ssub.s32 256, 256
          %434 = vsyncadd %s424, %s433
          %s435 = smul.addr %s26, 2
          %s436 = sadd.s32 %s431, %s435
          %s437 = smul.addr %s25, 4
          %s438 = sadd.s32 %s436, %s437
          %s439 = smul.addr %s438, 64
          %s440 = scalar_lea.hbm %s2, %s439
          %s441 = sshll.u32 %s427, 4
          %s442 = int_to_ptr.vmem [resolvable:$true] %s441
          %447 = dma.vmem_to_hbm [thread:$0]  %s442, 256, %s440, %s424, 128, 128, 8
        $region40: #{tpu_custom_call.1} parent=27 // pred_fallthru
          _
      $region28: #{tpu_custom_call.1} parent=5 // pred_fallthru
        _
      %p448 = scmp.le.s32.totalorder 2, %s15
      // Predicated region
      $region41: #{tpu_custom_call.1} parent=5 // pred_check
        %p449 = pneg %p448
      $region42: #{tpu_custom_call.1} parent=5 // pred_check_branch
        %451 = sbr.rel (%p449) target = $region44
      $region43: #{tpu_custom_call.1} parent=5 // pred_region
        %s452 = ssub.s32 %s15, 2
        // Predicated region
        $region45: #{tpu_custom_call.1} parent=43 // pred_check
          %p453 = pneg %p118
        $region46: #{tpu_custom_call.1} parent=43 // pred_check_branch
          %455 = sbr.rel (%p453) target = $region48
        $region47: #{tpu_custom_call.1} parent=43 // pred_region
          %s456 = sand.u32 %s103, 1
          %s457 = scalar_lea.sflag [#allocation4], %s456
          %s458 = sand.u32 %s103, 1
          %s459 = smul.addr %s458, 16
          %s460 = scalar_lea.vmem [#allocation7], %s459
          %461 = dma.done %s457, 256
        $region48: #{tpu_custom_call.1} parent=43 // pred_fallthru
          _
      $region44: #{tpu_custom_call.1} parent=5 // pred_fallthru
        _
    $region6: #{tpu_custom_call.1} parent=1 // loop_footer
      %s19 = sadd.s32 1, %s15
    $region7: #{tpu_custom_call.1} parent=1 // loop_footer_branch
      %14 = sbr.rel target = $region3
    $region8: #{tpu_custom_call.1} parent=1 // loop_exit
      _
    %462 = vsyncpa [#allocation3], 1
    %s463 = scalar_lea.sflag [#allocation3], 1
    %464 = vsyncpa %s463, 1
    %465 = vsyncpa [#allocation4], 1
    %s466 = scalar_lea.sflag [#allocation4], 1
    %467 = vsyncpa %s466, 1
    %468 = vsyncpa [#allocation5], 1
    %s469 = scalar_lea.sflag [#allocation5], 1
    %470 = vsyncpa %s469, 1

</llo_original>
